<compile_context>
chip_gen: v6e
topology: v6e:2x2x1
jax: 0.10.0
libtpu: 0.0.40
codegen_flags: <defaults>
</compile_context>

<pallas_src>
import functools

import jax
import jax.numpy as jnp
from jax import lax
from jax.experimental import pallas as pl
from jax.experimental.pallas import tpu as pltpu


def _dwconv_kernel(x_mid_ref, x_top_ref, x_bot_ref, w_ref, b_ref, o_ref, *,
                   channels):
    """One (batch, row-band) tile of the depthwise 3x3 conv.

    Shapes (WC = W * C):
      x_mid_ref: (1, TH, WC)     rows of this band
      x_top_ref: (1, 1, 1, WC)   row just above the band (clamped at image top)
      x_bot_ref: (1, 1, 1, WC)   row just below the band (clamped at bottom)
      w_ref:     (3, 3, WC)      per-channel taps, pre-tiled along W
      b_ref:     (1, WC)         bias, pre-tiled along W
      o_ref:     (1, TH, WC)
    """
    TH, WC = o_ref.shape[1], o_ref.shape[2]
    C = channels

    h_idx = pl.program_id(1)
    is_first = h_idx == 0
    is_last = h_idx == pl.num_programs(1) - 1

    # f32 accumulation (v5e VPU has no bf16 math; casts are no-ops for f32 in).
    mid = x_mid_ref[0].astype(jnp.float32)                      # (TH, WC)

    # Halo rows; zeroed at the image boundary to implement pad=1 along H.
    top = x_top_ref[0, 0].astype(jnp.float32)                   # (1, WC)
    bot = x_bot_ref[0, 0].astype(jnp.float32)                   # (1, WC)
    top = jnp.where(is_first, jnp.zeros_like(top), top)
    bot = jnp.where(is_last, jnp.zeros_like(bot), bot)

    row_idx = lax.broadcasted_iota(jnp.int32, (TH, WC), 0)
    lane_idx = lax.broadcasted_iota(jnp.int32, (TH, WC), 1)
    left_ok = lane_idx >= C          # input column w-1 exists (pad=1 along W)
    right_ok = lane_idx < WC - C     # input column w+1 exists

    def accum(acc, band, kh):
        # dw = -1 / 0 / +1 taps.  Lane rolls run on the (otherwise idle) XLU;
        # wrapped lanes are masked to zero so the W-pad stays exact.
        left = jnp.where(left_ok, pltpu.roll(band, C, axis=1), 0.0)
        right = jnp.where(right_ok, pltpu.roll(band, WC - C, axis=1), 0.0)
        return (acc
                + left * w_ref[kh, 0].astype(jnp.float32)
                + band * w_ref[kh, 1].astype(jnp.float32)
                + right * w_ref[kh, 2].astype(jnp.float32))

    acc = jnp.zeros((TH, WC), jnp.float32)
    # dh = 0: center rows.
    acc = accum(acc, mid, 1)
    # dh = -1: rows shifted down by one; row 0 comes from the top halo row.
    band_up = jnp.where(row_idx == 0, top, pltpu.roll(mid, 1, axis=0))
    acc = accum(acc, band_up, 0)
    # dh = +1: rows shifted up by one; last row comes from the bottom halo row.
    band_dn = jnp.where(row_idx == TH - 1, bot, pltpu.roll(mid, TH - 1, axis=0))
    acc = accum(acc, band_dn, 2)

    acc = acc + b_ref[0].astype(jnp.float32)
    o_ref[0] = acc.astype(o_ref.dtype)


def _pick_block_h(H, WC, itemsize, budget_bytes=1 << 20):
    """Largest row band TH (dividing H, multiple of 8 when possible) whose f32
    working tile stays under `budget_bytes`, so double-buffered in/out blocks
    fit comfortably in VMEM on every TPU generation (incl. v7x's 64 MiB) and
    the grid stays long enough to pipeline."""
    bytes_per_row = WC * max(int(itemsize), 4)
    cands = [d for d in range(8, H + 1, 8) if H % d == 0]
    if H not in cands:
        cands.append(H)                 # whole image is always a legal band
    fitting = [d for d in cands if d * bytes_per_row <= budget_bytes]
    return max(fitting) if fitting else min(cands)


def dwconv_pallas(x, weight, bias, H, W, *, block_h=None):
    """Depthwise 3x3 conv (stride 1, pad 1, groups=C, bias) on tokens.

    x: (B, N, C) with N == H*W; weight: (3, 3, C); bias: (C,).  Returns (B, N, C).
    """
    B, N, C = x.shape
    assert N == H * W
    WC = W * C

    # (B, N, C) -> (B, H, W*C): pure reshapes (channels stay fastest), so the
    # lane axis is the dense (W, C) pair.  No host-side padding pass.
    x_rows = x.reshape(B, H, WC)
    x_halo = x.reshape(B, H, 1, WC)     # same buffer, used for 1-row halo DMAs

    # Pre-tile the tiny per-channel params along W so they broadcast on lanes.
    w_flat = jnp.tile(weight, (1, 1, W))            # (3, 3, W*C)
    b_flat = jnp.tile(bias, W).reshape(1, WC)       # (1, W*C)

    th = block_h if block_h is not None else _pick_block_h(
        H, WC, x.dtype.itemsize)
    assert H % th == 0, "block_h must divide H"
    n_h = H // th

    itemsize = int(x.dtype.itemsize)
    flops = 2 * 9 * B * H * W * C + B * H * W * C
    bytes_accessed = (2 * B * H * WC + 2 * B * n_h * WC) * itemsize \
        + (9 + 1) * WC * 4

    out = pl.pallas_call(
        functools.partial(_dwconv_kernel, channels=C),
        out_shape=jax.ShapeDtypeStruct((B, H, WC), x.dtype),
        grid=(B, n_h),
        in_specs=[
            pl.BlockSpec((1, th, WC), lambda b, h: (b, h, 0)),
            pl.BlockSpec((1, 1, 1, WC),
                         lambda b, h: (b, jnp.maximum(h * th - 1, 0), 0, 0)),
            pl.BlockSpec((1, 1, 1, WC),
                         lambda b, h: (b, jnp.minimum((h + 1) * th, H - 1), 0, 0)),
            pl.BlockSpec((3, 3, WC), lambda b, h: (0, 0, 0)),
            pl.BlockSpec((1, WC), lambda b, h: (0, 0)),
        ],
        out_specs=pl.BlockSpec((1, th, WC), lambda b, h: (b, h, 0)),
        compiler_params=pltpu.CompilerParams(
            dimension_semantics=("parallel", "parallel")),
        cost_estimate=pl.CostEstimate(
            flops=flops, transcendentals=0, bytes_accessed=bytes_accessed),
    )(x_rows, x_halo, x_halo, w_flat, b_flat)

    return out.reshape(B, N, C)


def dwconv_ref(x, weight, bias, H, W):
    """Pure-JAX reference mirroring the PyTorch NCHW depthwise conv."""
    B, N, C = x.shape
    x_nchw = jnp.transpose(x, (0, 2, 1)).reshape(B, C, H, W)
    w = jnp.transpose(weight, (2, 0, 1))[:, None, :, :]  # (C, 1, 3, 3) == OIHW
    out = lax.conv_general_dilated(
        x_nchw, w, window_strides=(1, 1), padding="SAME",
        feature_group_count=C,
        dimension_numbers=("NCHW", "OIHW", "NCHW"))
    out = out + bias[None, :, None, None]
    return jnp.transpose(out.reshape(B, C, N), (0, 2, 1))


if __name__ == "__main__":
    # Small shapes consistent with the module: dim=C channels, N = H*W tokens.
    B, H, W, C = 2, 16, 16, 32
    N = H * W

    key = jax.random.PRNGKey(0)
    kx, kw, kb = jax.random.split(key, 3)

    x = jax.random.normal(kx, (B, N, C), dtype=jnp.float32)
    # Deterministic synthetic parameters (Conv2d(dim, dim, 3, groups=dim)):
    # torch weight shape (C, 1, 3, 3) -> stored here as (3, 3, C); bias (C,).
    bound = 1.0 / 3.0  # 1/sqrt(fan_in), fan_in = 1 * 3 * 3
    weight = jax.random.uniform(kw, (3, 3, C), jnp.float32, -bound, bound)
    bias = jax.random.uniform(kb, (C,), jnp.float32, -bound, bound)

    ref = dwconv_ref(x, weight, bias, H, W)

    # Row-tiled path (grid=(B, 2)) exercises the interior halo handling.
    out_tiled = jax.block_until_ready(
        dwconv_pallas(x, weight, bias, H, W, block_h=8))
    # Auto-picked band (whole image per batch element at this small size).
    out_auto = jax.block_until_ready(dwconv_pallas(x, weight, bias, H, W))

    assert out_tiled.shape == (B, N, C)
    assert jnp.allclose(out_tiled, ref, rtol=1e-5, atol=1e-5), "tiled mismatch"
    assert jnp.allclose(out_auto, ref, rtol=1e-5, atol=1e-5), "auto mismatch"

    print("KERNEL_OK")
</pallas_src>

<mosaic_0001>
module attributes {stable_mosaic.version = 11 : i64} {
  func.func @_dwconv_kernel(%arg0: i32, %arg1: i32, %arg2: memref<1x8x512xf32, #tpu.memory_space<vmem>>, %arg3: memref<1x1x1x512xf32, #tpu.memory_space<vmem>>, %arg4: memref<1x1x1x512xf32, #tpu.memory_space<vmem>>, %arg5: memref<3x3x512xf32, #tpu.memory_space<vmem>>, %arg6: memref<1x512xf32, #tpu.memory_space<vmem>>, %arg7: memref<1x8x512xf32, #tpu.memory_space<vmem>>) attributes {dimension_semantics = [#tpu.dimension_semantics<parallel>, #tpu.dimension_semantics<parallel>], iteration_bounds = array<i64: 2, 2>, scalar_prefetch = 0 : i64, scratch_operands = 0 : i64, tpu.core_type = #tpu.core_type<tc>, window_params = [{transform_indices = @transform_0, window_bounds = array<i64: 1, 8, 512>}, {transform_indices = @transform_1, window_bounds = array<i64: 1, 1, 1, 512>}, {transform_indices = @transform_2, window_bounds = array<i64: 1, 1, 1, 512>}, {pipeline_mode = #tpu.pipeline_mode<synchronous>, transform_indices = @transform_3, window_bounds = array<i64: 3, 3, 512>}, {pipeline_mode = #tpu.pipeline_mode<synchronous>, transform_indices = @transform_4, window_bounds = array<i64: 1, 512>}, {transform_indices = @transform_5, window_bounds = array<i64: 1, 8, 512>}]} {
    %c0_i32 = arith.constant 0 : i32
    %0 = arith.cmpi eq, %arg1, %c0_i32 : i32
    %c1_i32 = arith.constant 1 : i32
    %1 = arith.cmpi eq, %arg1, %c1_i32 : i32
    %c0 = arith.constant 0 : index
    %c0_0 = arith.constant 0 : index
    %c0_1 = arith.constant 0 : index
    %2 = vector.load %arg2[%c0, %c0_0, %c0_1] : memref<1x8x512xf32, #tpu.memory_space<vmem>>, vector<1x8x512xf32>
    %3 = vector.shape_cast %2 : vector<1x8x512xf32> to vector<8x512xf32>
    %c0_2 = arith.constant 0 : index
    %c0_3 = arith.constant 0 : index
    %c0_4 = arith.constant 0 : index
    %c0_5 = arith.constant 0 : index
    %4 = vector.load %arg3[%c0_2, %c0_3, %c0_4, %c0_5] : memref<1x1x1x512xf32, #tpu.memory_space<vmem>>, vector<1x1x1x512xf32>
    %5 = vector.shape_cast %4 : vector<1x1x1x512xf32> to vector<1x512xf32>
    %c0_6 = arith.constant 0 : index
    %c0_7 = arith.constant 0 : index
    %c0_8 = arith.constant 0 : index
    %c0_9 = arith.constant 0 : index
    %6 = vector.load %arg4[%c0_6, %c0_7, %c0_8, %c0_9] : memref<1x1x1x512xf32, #tpu.memory_space<vmem>>, vector<1x1x1x512xf32>
    %7 = vector.shape_cast %6 : vector<1x1x1x512xf32> to vector<1x512xf32>
    %cst = arith.constant 0.000000e+00 : f32
    %8 = vector.broadcast %cst : f32 to vector<1x512xf32>
    %9 = arith.select %0, %8, %5 : vector<1x512xf32>
    %cst_10 = arith.constant 0.000000e+00 : f32
    %10 = vector.broadcast %cst_10 : f32 to vector<1x512xf32>
    %11 = arith.select %1, %10, %7 : vector<1x512xf32>
    %12 = tpu.iota {dimensions = array<i32: 0>} : vector<8x512xi32>
    %13 = tpu.iota {dimensions = array<i32: 1>} : vector<8x512xi32>
    %c32_i32 = arith.constant 32 : i32
    %14 = vector.broadcast %c32_i32 : i32 to vector<8x512xi32>
    %15 = arith.cmpi sge, %13, %14 : vector<8x512xi32>
    %c480_i32 = arith.constant 480 : i32
    %16 = vector.broadcast %c480_i32 : i32 to vector<8x512xi32>
    %17 = arith.cmpi slt, %13, %16 : vector<8x512xi32>
    %cst_11 = arith.constant 0.000000e+00 : f32
    %18 = vector.broadcast %cst_11 : f32 to vector<8x512xf32>
    %c32_i32_12 = arith.constant 32 : i32
    %19 = tpu.dynamic_rotate %3 by %c32_i32_12 dim 1 : vector<8x512xf32>, i32 -> vector<8x512xf32>
    %cst_13 = arith.constant 0.000000e+00 : f32
    %20 = vector.broadcast %cst_13 : f32 to vector<8x512xf32>
    %21 = arith.select %15, %19, %20 : vector<8x512xi1>, vector<8x512xf32>
    %c480_i32_14 = arith.constant 480 : i32
    %22 = tpu.dynamic_rotate %3 by %c480_i32_14 dim 1 : vector<8x512xf32>, i32 -> vector<8x512xf32>
    %cst_15 = arith.constant 0.000000e+00 : f32
    %23 = vector.broadcast %cst_15 : f32 to vector<8x512xf32>
    %24 = arith.select %17, %22, %23 : vector<8x512xi1>, vector<8x512xf32>
    %c1 = arith.constant 1 : index
    %c0_16 = arith.constant 0 : index
    %c0_17 = arith.constant 0 : index
    %25 = vector.load %arg5[%c1, %c0_16, %c0_17] : memref<3x3x512xf32, #tpu.memory_space<vmem>>, vector<1x1x512xf32>
    %26 = vector.shape_cast %25 : vector<1x1x512xf32> to vector<512xf32>
    %27 = vector.shape_cast %26 : vector<512xf32> to vector<1x512xf32>
    %28 = vector.broadcast %27 : vector<1x512xf32> to vector<8x512xf32>
    %29 = arith.mulf %21, %28 : vector<8x512xf32>
    %30 = arith.addf %18, %29 : vector<8x512xf32>
    %c1_18 = arith.constant 1 : index
    %c1_19 = arith.constant 1 : index
    %c0_20 = arith.constant 0 : index
    %31 = vector.load %arg5[%c1_18, %c1_19, %c0_20] : memref<3x3x512xf32, #tpu.memory_space<vmem>>, vector<1x1x512xf32>
    %32 = vector.shape_cast %31 : vector<1x1x512xf32> to vector<512xf32>
    %33 = vector.shape_cast %32 : vector<512xf32> to vector<1x512xf32>
    %34 = vector.broadcast %33 : vector<1x512xf32> to vector<8x512xf32>
    %35 = arith.mulf %3, %34 : vector<8x512xf32>
    %36 = arith.addf %30, %35 : vector<8x512xf32>
    %c1_21 = arith.constant 1 : index
    %c2 = arith.constant 2 : index
    %c0_22 = arith.constant 0 : index
    %37 = vector.load %arg5[%c1_21, %c2, %c0_22] : memref<3x3x512xf32, #tpu.memory_space<vmem>>, vector<1x1x512xf32>
    %38 = vector.shape_cast %37 : vector<1x1x512xf32> to vector<512xf32>
    %39 = vector.shape_cast %38 : vector<512xf32> to vector<1x512xf32>
    %40 = vector.broadcast %39 : vector<1x512xf32> to vector<8x512xf32>
    %41 = arith.mulf %24, %40 : vector<8x512xf32>
    %42 = arith.addf %36, %41 : vector<8x512xf32>
    %c0_i32_23 = arith.constant 0 : i32
    %43 = vector.broadcast %c0_i32_23 : i32 to vector<8x512xi32>
    %44 = arith.cmpi eq, %12, %43 : vector<8x512xi32>
    %c1_i32_24 = arith.constant 1 : i32
    %45 = tpu.dynamic_rotate %3 by %c1_i32_24 dim 0 : vector<8x512xf32>, i32 -> vector<8x512xf32>
    %46 = vector.shape_cast %9 : vector<1x512xf32> to vector<1x512xf32>
    %47 = vector.broadcast %46 : vector<1x512xf32> to vector<8x512xf32>
    %48 = arith.select %44, %47, %45 : vector<8x512xi1>, vector<8x512xf32>
    %c32_i32_25 = arith.constant 32 : i32
    %49 = tpu.dynamic_rotate %48 by %c32_i32_25 dim 1 : vector<8x512xf32>, i32 -> vector<8x512xf32>
    %cst_26 = arith.constant 0.000000e+00 : f32
    %50 = vector.broadcast %cst_26 : f32 to vector<8x512xf32>
    %51 = arith.select %15, %49, %50 : vector<8x512xi1>, vector<8x512xf32>
    %c480_i32_27 = arith.constant 480 : i32
    %52 = tpu.dynamic_rotate %48 by %c480_i32_27 dim 1 : vector<8x512xf32>, i32 -> vector<8x512xf32>
    %cst_28 = arith.constant 0.000000e+00 : f32
    %53 = vector.broadcast %cst_28 : f32 to vector<8x512xf32>
    %54 = arith.select %17, %52, %53 : vector<8x512xi1>, vector<8x512xf32>
    %c0_29 = arith.constant 0 : index
    %c0_30 = arith.constant 0 : index
    %c0_31 = arith.constant 0 : index
    %55 = vector.load %arg5[%c0_29, %c0_30, %c0_31] : memref<3x3x512xf32, #tpu.memory_space<vmem>>, vector<1x1x512xf32>
    %56 = vector.shape_cast %55 : vector<1x1x512xf32> to vector<512xf32>
    %57 = vector.shape_cast %56 : vector<512xf32> to vector<1x512xf32>
    %58 = vector.broadcast %57 : vector<1x512xf32> to vector<8x512xf32>
    %59 = arith.mulf %51, %58 : vector<8x512xf32>
    %60 = arith.addf %42, %59 : vector<8x512xf32>
    %c0_32 = arith.constant 0 : index
    %c1_33 = arith.constant 1 : index
    %c0_34 = arith.constant 0 : index
    %61 = vector.load %arg5[%c0_32, %c1_33, %c0_34] : memref<3x3x512xf32, #tpu.memory_space<vmem>>, vector<1x1x512xf32>
    %62 = vector.shape_cast %61 : vector<1x1x512xf32> to vector<512xf32>
    %63 = vector.shape_cast %62 : vector<512xf32> to vector<1x512xf32>
    %64 = vector.broadcast %63 : vector<1x512xf32> to vector<8x512xf32>
    %65 = arith.mulf %48, %64 : vector<8x512xf32>
    %66 = arith.addf %60, %65 : vector<8x512xf32>
    %c0_35 = arith.constant 0 : index
    %c2_36 = arith.constant 2 : index
    %c0_37 = arith.constant 0 : index
    %67 = vector.load %arg5[%c0_35, %c2_36, %c0_37] : memref<3x3x512xf32, #tpu.memory_space<vmem>>, vector<1x1x512xf32>
    %68 = vector.shape_cast %67 : vector<1x1x512xf32> to vector<512xf32>
    %69 = vector.shape_cast %68 : vector<512xf32> to vector<1x512xf32>
    %70 = vector.broadcast %69 : vector<1x512xf32> to vector<8x512xf32>
    %71 = arith.mulf %54, %70 : vector<8x512xf32>
    %72 = arith.addf %66, %71 : vector<8x512xf32>
    %c7_i32 = arith.constant 7 : i32
    %73 = vector.broadcast %c7_i32 : i32 to vector<8x512xi32>
    %74 = arith.cmpi eq, %12, %73 : vector<8x512xi32>
    %c7_i32_38 = arith.constant 7 : i32
    %75 = tpu.dynamic_rotate %3 by %c7_i32_38 dim 0 : vector<8x512xf32>, i32 -> vector<8x512xf32>
    %76 = vector.shape_cast %11 : vector<1x512xf32> to vector<1x512xf32>
    %77 = vector.broadcast %76 : vector<1x512xf32> to vector<8x512xf32>
    %78 = arith.select %74, %77, %75 : vector<8x512xi1>, vector<8x512xf32>
    %c32_i32_39 = arith.constant 32 : i32
    %79 = tpu.dynamic_rotate %78 by %c32_i32_39 dim 1 : vector<8x512xf32>, i32 -> vector<8x512xf32>
    %cst_40 = arith.constant 0.000000e+00 : f32
    %80 = vector.broadcast %cst_40 : f32 to vector<8x512xf32>
    %81 = arith.select %15, %79, %80 : vector<8x512xi1>, vector<8x512xf32>
    %c480_i32_41 = arith.constant 480 : i32
    %82 = tpu.dynamic_rotate %78 by %c480_i32_41 dim 1 : vector<8x512xf32>, i32 -> vector<8x512xf32>
    %cst_42 = arith.constant 0.000000e+00 : f32
    %83 = vector.broadcast %cst_42 : f32 to vector<8x512xf32>
    %84 = arith.select %17, %82, %83 : vector<8x512xi1>, vector<8x512xf32>
    %c2_43 = arith.constant 2 : index
    %c0_44 = arith.constant 0 : index
    %c0_45 = arith.constant 0 : index
    %85 = vector.load %arg5[%c2_43, %c0_44, %c0_45] : memref<3x3x512xf32, #tpu.memory_space<vmem>>, vector<1x1x512xf32>
    %86 = vector.shape_cast %85 : vector<1x1x512xf32> to vector<512xf32>
    %87 = vector.shape_cast %86 : vector<512xf32> to vector<1x512xf32>
    %88 = vector.broadcast %87 : vector<1x512xf32> to vector<8x512xf32>
    %89 = arith.mulf %81, %88 : vector<8x512xf32>
    %90 = arith.addf %72, %89 : vector<8x512xf32>
    %c2_46 = arith.constant 2 : index
    %c1_47 = arith.constant 1 : index
    %c0_48 = arith.constant 0 : index
    %91 = vector.load %arg5[%c2_46, %c1_47, %c0_48] : memref<3x3x512xf32, #tpu.memory_space<vmem>>, vector<1x1x512xf32>
    %92 = vector.shape_cast %91 : vector<1x1x512xf32> to vector<512xf32>
    %93 = vector.shape_cast %92 : vector<512xf32> to vector<1x512xf32>
    %94 = vector.broadcast %93 : vector<1x512xf32> to vector<8x512xf32>
    %95 = arith.mulf %78, %94 : vector<8x512xf32>
    %96 = arith.addf %90, %95 : vector<8x512xf32>
    %c2_49 = arith.constant 2 : index
    %c2_50 = arith.constant 2 : index
    %c0_51 = arith.constant 0 : index
    %97 = vector.load %arg5[%c2_49, %c2_50, %c0_51] : memref<3x3x512xf32, #tpu.memory_space<vmem>>, vector<1x1x512xf32>
    %98 = vector.shape_cast %97 : vector<1x1x512xf32> to vector<512xf32>
    %99 = vector.shape_cast %98 : vector<512xf32> to vector<1x512xf32>
    %100 = vector.broadcast %99 : vector<1x512xf32> to vector<8x512xf32>
    %101 = arith.mulf %84, %100 : vector<8x512xf32>
    %102 = arith.addf %96, %101 : vector<8x512xf32>
    %c0_52 = arith.constant 0 : index
    %c0_53 = arith.constant 0 : index
    %103 = vector.load %arg6[%c0_52, %c0_53] : memref<1x512xf32, #tpu.memory_space<vmem>>, vector<1x512xf32>
    %104 = vector.shape_cast %103 : vector<1x512xf32> to vector<512xf32>
    %105 = vector.shape_cast %104 : vector<512xf32> to vector<1x512xf32>
    %106 = vector.broadcast %105 : vector<1x512xf32> to vector<8x512xf32>
    %107 = arith.addf %102, %106 : vector<8x512xf32>
    %c0_54 = arith.constant 0 : index
    %c0_55 = arith.constant 0 : index
    %c0_56 = arith.constant 0 : index
    %108 = vector.load %arg7[%c0_54, %c0_55, %c0_56] : memref<1x8x512xf32, #tpu.memory_space<vmem>>, vector<1x8x512xf32>
    %109 = vector.shape_cast %108 : vector<1x8x512xf32> to vector<8x512xf32>
    %110 = vector.shape_cast %107 : vector<8x512xf32> to vector<1x8x512xf32>
    tpu.vector_store %arg7[%c0_54, %c0_55, %c0_56], %110 {strides = array<i32>} : memref<1x8x512xf32, #tpu.memory_space<vmem>>, vector<1x8x512xf32>,
    return
  }
  func.func @transform_0(%arg0: i32, %arg1: i32) -> (i32, i32, i32) {
    %c0_i32 = arith.constant 0 : i32
    %c0_i32_0 = arith.constant 0 : i32
    return %arg0, %arg1, %c0_i32 : i32, i32, i32
  }
  func.func @transform_1(%arg0: i32, %arg1: i32) -> (i32, i32, i32, i32) {
    %c8_i32 = arith.constant 8 : i32
    %0 = arith.muli %arg1, %c8_i32 : i32
    %c1_i32 = arith.constant 1 : i32
    %1 = arith.subi %0, %c1_i32 : i32
    %c0_i32 = arith.constant 0 : i32
    %2 = arith.maxsi %1, %c0_i32 : i32
    %c0_i32_0 = arith.constant 0 : i32
    %c0_i32_1 = arith.constant 0 : i32
    %c0_i32_2 = arith.constant 0 : i32
    return %arg0, %2, %c0_i32_0, %c0_i32_1 : i32, i32, i32, i32
  }
  func.func @transform_2(%arg0: i32, %arg1: i32) -> (i32, i32, i32, i32) {
    %c1_i32 = arith.constant 1 : i32
    %0 = arith.addi %arg1, %c1_i32 : i32
    %c8_i32 = arith.constant 8 : i32
    %1 = arith.muli %0, %c8_i32 : i32
    %c15_i32 = arith.constant 15 : i32
    %2 = arith.minsi %1, %c15_i32 : i32
    %c0_i32 = arith.constant 0 : i32
    %c0_i32_0 = arith.constant 0 : i32
    %c0_i32_1 = arith.constant 0 : i32
    return %arg0, %2, %c0_i32, %c0_i32_0 : i32, i32, i32, i32
  }
  func.func @transform_3(%arg0: i32, %arg1: i32) -> (i32, i32, i32) {
    %c0_i32 = arith.constant 0 : i32
    %c0_i32_0 = arith.constant 0 : i32
    %c0_i32_1 = arith.constant 0 : i32
    %c0_i32_2 = arith.constant 0 : i32
    return %c0_i32, %c0_i32_0, %c0_i32_1 : i32, i32, i32
  }
  func.func @transform_4(%arg0: i32, %arg1: i32) -> (i32, i32) {
    %c0_i32 = arith.constant 0 : i32
    %c0_i32_0 = arith.constant 0 : i32
    %c0_i32_1 = arith.constant 0 : i32
    return %c0_i32, %c0_i32_0 : i32, i32
  }
  func.func @transform_5(%arg0: i32, %arg1: i32) -> (i32, i32, i32) {
    %c0_i32 = arith.constant 0 : i32
    %c0_i32_0 = arith.constant 0 : i32
    return %arg0, %arg1, %c0_i32 : i32, i32, i32
  }
}

</mosaic_0001>

<llo_original>
// kernel: tpu_custom_call.1
$region0: #{tpu_custom_call.1}
  #allocation0 [shape = 'u32[]', space=smem, size = 0x4, offset = 0x4, fixed_abs, tag = 'smem constant byte address 0x4 - core index']
  #allocation1 [shape = 'u32[144,128]{1,0:T(1,128)}', space=vmem, size = 0x12000, scoped, tag = 'internal scratch']
  %s0 = inlined_call_operand.hbm [shape: f32[2,16,512], index: 0, kind: input, shape index: {}]
  %s1 = inlined_call_operand.hbm [shape: f32[2,16,1,512], index: 1, kind: input, shape index: {}]
  %s2 = inlined_call_operand.hbm [shape: f32[2,16,1,512], index: 2, kind: input, shape index: {}]
  %s3 = inlined_call_operand.hbm [shape: f32[3,3,512], index: 3, kind: input, shape index: {}]
  %s4 = inlined_call_operand.vmem [shape: f32[1,512], index: 4, kind: input, shape index: {}]
  %s5 = inlined_call_operand.hbm [shape: f32[2,16,512], index: 5, kind: output, shape index: {}]
  %s6 = sld [smem:[#allocation0]]
  $region69: #{tpu_custom_call.1} parent=0
    _
  %s8 = ssub.s32 1, %s6
  %s9 = scalar_select 0, %s8, %s6
  $region1: #{tpu_custom_call.1} parent=0
    #allocation2 [shape = 'u8[32768]{0}', space=vmem, size = 0x8000, scoped, tag = 'input window, operand 0']
    #allocation3 [shape = 's32[2]{0}', space=sflag, size = 0x8, scoped, tag = 'scoped memory for tpu_custom_call.1']
    #allocation4 [shape = 's32[2]{0}', space=sflag, size = 0x8, scoped, tag = 'scoped memory for tpu_custom_call.1']
    #allocation5 [shape = 'u8[4096]{0}', space=vmem, size = 0x1000, scoped, tag = 'input window, operand 1']
    #allocation6 [shape = 's32[2]{0}', space=sflag, size = 0x8, scoped, tag = 'scoped memory for tpu_custom_call.1']
    #allocation7 [shape = 'u8[4096]{0}', space=vmem, size = 0x1000, scoped, tag = 'input window, operand 2']
    #allocation8 [shape = 'u8[24576]{0}', space=vmem, size = 0x6000, scoped, tag = 'input window, operand 3, single buffered']
    #allocation9 [shape = 's32[1]{0}', space=sflag, size = 0x4, scoped, tag = 'scoped memory for tpu_custom_call.1']
    #allocation10 [shape = 'u8[32768]{0}', space=vmem, size = 0x8000, scoped, tag = 'output window, operand 0']
    %10 = vsyncpa [#allocation3], 0
    %s11 = scalar_lea.sflag [#allocation3], 1
    %12 = vsyncpa %s11, 0
    %13 = vsyncpa [#allocation6], 0
    %s14 = scalar_lea.sflag [#allocation6], 1
    %15 = vsyncpa %s14, 0
    %16 = vsyncpa [#allocation9], 0
    %17 = vsyncpa [#allocation4], 0
    %s18 = scalar_lea.sflag [#allocation4], 1
    %19 = vsyncpa %s18, 0
    loop: start=0, step=1, limit=6
    $region2: #{tpu_custom_call.1} parent=1 // loop_pre_header
      _
    $region3: #{tpu_custom_call.1} parent=1 // loop_header
      %s21 = sphi 0, %s25
      %p22 = scmp.ge.s32.totalorder %s21, 6
      %s28 = sphi 0, %s40
      %s29 = sphi 0, %s36
      %s30 = sphi 0, %s28
      %s31 = sphi 0, %s29
      %s32 = sphi 0, %s30
      %s33 = sphi 0, %s31
      %s45 = sphi 0, %s47
      %s48 = sphi 0, %s45
      %s49 = sphi 0, %s48
      %s65 = sphi 0, %s49
      %s81 = sphi 0, %s83
      %s84 = sphi 0, %s81
      %s85 = sphi 0, %s84
      %s101 = sphi 0, %s85
      %s117 = sphi 0, %s119
      %s120 = sphi 0, %s117
      %s121 = sphi 0, %s120
      %s137 = sphi 0, %s121
      %s141 = sphi 0, %s141
      %s143 = sphi 0, %s141
      %s144 = sphi 0, %s143
      %s158 = sphi 0, %s144
      %s162 = sphi 0, %s162
      %s164 = sphi 0, %s162
      %s165 = sphi 0, %s164
      %s179 = sphi 0, %s165
      %s187 = sphi 0, %s189
      %s190 = sphi 0, %s187
      %s191 = sphi 0, %s190
      %s207 = sphi 0, %s191
    $region4: #{tpu_custom_call.1} parent=1 // loop_header_branch
      %24 = sbr.rel (%p22) target = $region8
    $region5: #{tpu_custom_call.1} parent=1 // loop_body
      %s26 = ssub.s32 %s21, 1
      %s27 = ssub.s32 %s21, 2
      %s34 = sadd.s32 1, %s29
      %p35 = scmp.ge.s32.totalorder %s34, 2
      %s36 = scalar_select %p35, 0, %s34
      %s37 = sadd.s32 1, %s28
      %s38 = scalar_select %p35, %s37, %s28
      %p39 = scmp.ge.s32.totalorder %s38, 2
      %s40 = scalar_select %p39, 0, %s38
      %s41 = ssub.s32 %s28, %s40
      %s42 = ssub.s32 %s29, %s36
      %s43 = sor.u32 %s41, %s42
      %p44 = scmp.eq.s32.totalorder %s43, 0
      %s46 = sadd.s32 %s45, 1
      %s47 = scalar_select %p44, %s45, %s46
      %p50 = pneg %p44
      %p51 = scmp.eq.s32.totalorder %s21, 3
      %p52 = por %p50, %p51
      %p53 = scmp.ne.s32.totalorder %s45, %s48
      %p54 = scmp.eq.s32.totalorder %s21, 0
      %p55 = por %p53, %p54
      %p56 = scmp.ne.s32.totalorder %s45, %s48
      %p57 = scmp.eq.s32.totalorder %s26, 3
      %p58 = por %p56, %p57
      %p59 = scmp.ne.s32.totalorder %s48, %s49
      %p60 = scmp.eq.s32.totalorder %s26, 0
      %p61 = por %p59, %p60
      %p62 = scmp.ne.s32.totalorder %s48, %s49
      %p63 = scmp.eq.s32.totalorder %s27, 3
      %p64 = por %p62, %p63
      %p66 = scmp.ne.s32.totalorder %s49, %s65
      %p67 = scmp.eq.s32.totalorder %s27, 0
      %p68 = por %p66, %p67
      %s69 = smul.u32 %s29, 8
      %s70 = ssub.s32 %s69, 1
      %p71 = scmp.gt.s32.totalorder %s70, 0
      %s72 = scalar_select %p71, %s70, 0
      %s73 = smul.u32 %s36, 8
      %s74 = ssub.s32 %s73, 1
      %p75 = scmp.gt.s32.totalorder %s74, 0
      %s76 = scalar_select %p75, %s74, 0
      %s77 = ssub.s32 %s28, %s40
      %s78 = ssub.s32 %s72, %s76
      %s79 = sor.u32 %s77, %s78
      %p80 = scmp.eq.s32.totalorder %s79, 0
      %s82 = sadd.s32 %s81, 1
      %s83 = scalar_select %p80, %s81, %s82
      %p86 = pneg %p80
      %p87 = scmp.eq.s32.totalorder %s21, 3
      %p88 = por %p86, %p87
      %p89 = scmp.ne.s32.totalorder %s81, %s84
      %p90 = scmp.eq.s32.totalorder %s21, 0
      %p91 = por %p89, %p90
      %p92 = scmp.ne.s32.totalorder %s81, %s84
      %p93 = scmp.eq.s32.totalorder %s26, 3
      %p94 = por %p92, %p93
      %p95 = scmp.ne.s32.totalorder %s84, %s85
      %p96 = scmp.eq.s32.totalorder %s26, 0
      %p97 = por %p95, %p96
      %p98 = scmp.ne.s32.totalorder %s84, %s85
      %p99 = scmp.eq.s32.totalorder %s27, 3
      %p100 = por %p98, %p99
      %p102 = scmp.ne.s32.totalorder %s85, %s101
      %p103 = scmp.eq.s32.totalorder %s27, 0
      %p104 = por %p102, %p103
      %s105 = sadd.s32 %s29, 1
      %s106 = smul.u32 %s105, 8
      %p107 = scmp.lt.s32.totalorder %s106, 15
      %s108 = scalar_select %p107, %s106, 15
      %s109 = sadd.s32 %s36, 1
      %s110 = smul.u32 %s109, 8
      %p111 = scmp.lt.s32.totalorder %s110, 15
      %s112 = scalar_select %p111, %s110, 15
      %s113 = ssub.s32 %s28, %s40
      %s114 = ssub.s32 %s108, %s112
      %s115 = sor.u32 %s113, %s114
      %p116 = scmp.eq.s32.totalorder %s115, 0
      %s118 = sadd.s32 %s117, 1
      %s119 = scalar_select %p116, %s117, %s118
      %p122 = pneg %p116
      %p123 = scmp.eq.s32.totalorder %s21, 3
      %p124 = por %p122, %p123
      %p125 = scmp.ne.s32.totalorder %s117, %s120
      %p126 = scmp.eq.s32.totalorder %s21, 0
      %p127 = por %p125, %p126
      %p128 = scmp.ne.s32.totalorder %s117, %s120
      %p129 = scmp.eq.s32.totalorder %s26, 3
      %p130 = por %p128, %p129
      %p131 = scmp.ne.s32.totalorder %s120, %s121
      %p132 = scmp.eq.s32.totalorder %s26, 0
      %p133 = por %p131, %p132
      %p134 = scmp.ne.s32.totalorder %s120, %s121
      %p135 = scmp.eq.s32.totalorder %s27, 3
      %p136 = por %p134, %p135
      %p138 = scmp.ne.s32.totalorder %s121, %s137
      %p139 = scmp.eq.s32.totalorder %s27, 0
      %p140 = por %p138, %p139
      %s142 = sadd.s32 %s141, 1
      %p145 = scmp.eq.s32.totalorder %s21, 3
      %p146 = scmp.ne.s32.totalorder %s141, %s143
      %p147 = scmp.eq.s32.totalorder %s21, 0
      %p148 = por %p146, %p147
      %p149 = scmp.ne.s32.totalorder %s141, %s143
      %p150 = scmp.eq.s32.totalorder %s26, 3
      %p151 = por %p149, %p150
      %p152 = scmp.ne.s32.totalorder %s143, %s144
      %p153 = scmp.eq.s32.totalorder %s26, 0
      %p154 = por %p152, %p153
      %p155 = scmp.ne.s32.totalorder %s143, %s144
      %p156 = scmp.eq.s32.totalorder %s27, 3
      %p157 = por %p155, %p156
      %p159 = scmp.ne.s32.totalorder %s144, %s158
      %p160 = scmp.eq.s32.totalorder %s27, 0
      %p161 = por %p159, %p160
      %s163 = sadd.s32 %s162, 1
      %p166 = scmp.eq.s32.totalorder %s21, 3
      %p167 = scmp.ne.s32.totalorder %s162, %s164
      %p168 = scmp.eq.s32.totalorder %s21, 0
      %p169 = por %p167, %p168
      %p170 = scmp.ne.s32.totalorder %s162, %s164
      %p171 = scmp.eq.s32.totalorder %s26, 3
      %p172 = por %p170, %p171
      %p173 = scmp.ne.s32.totalorder %s164, %s165
      %p174 = scmp.eq.s32.totalorder %s26, 0
      %p175 = por %p173, %p174
      %p176 = scmp.ne.s32.totalorder %s164, %s165
      %p177 = scmp.eq.s32.totalorder %s27, 3
      %p178 = por %p176, %p177
      %p180 = scmp.ne.s32.totalorder %s165, %s179
      %p181 = scmp.eq.s32.totalorder %s27, 0
      %p182 = por %p180, %p181
      %s183 = ssub.s32 %s28, %s40
      %s184 = ssub.s32 %s29, %s36
      %s185 = sor.u32 %s183, %s184
      %p186 = scmp.eq.s32.totalorder %s185, 0
      %s188 = sadd.s32 %s187, 1
      %s189 = scalar_select %p186, %s187, %s188
      %p192 = pneg %p186
      %p193 = scmp.eq.s32.totalorder %s21, 3
      %p194 = por %p192, %p193
      %p195 = scmp.ne.s32.totalorder %s187, %s190
      %p196 = scmp.eq.s32.totalorder %s21, 0
      %p197 = por %p195, %p196
      %p198 = scmp.ne.s32.totalorder %s187, %s190
      %p199 = scmp.eq.s32.totalorder %s26, 3
      %p200 = por %p198, %p199
      %p201 = scmp.ne.s32.totalorder %s190, %s191
      %p202 = scmp.eq.s32.totalorder %s26, 0
      %p203 = por %p201, %p202
      %p204 = scmp.ne.s32.totalorder %s190, %s191
      %p205 = scmp.eq.s32.totalorder %s27, 3
      %p206 = por %p204, %p205
      %p208 = scmp.ne.s32.totalorder %s191, %s207
      %p209 = scmp.eq.s32.totalorder %s27, 0
      %p210 = por %p208, %p209
      %p211 = scmp.le.s32.totalorder 1, %s21
      %p212 = scmp.lt.s32.totalorder %s21, 5
      %p213 = pnand %p211, %p212
      %p214 = pneg %p213
      // Predicated region
      $region9: #{tpu_custom_call.1} parent=5 // pred_check
        _
      $region10: #{tpu_custom_call.1} parent=5 // pred_check_branch
        %216 = sbr.rel (%p213) target = $region12
      $region11: #{tpu_custom_call.1} parent=5 // pred_region
        %s217 = ssub.s32 %s21, 1
        // Predicated region
        $region13: #{tpu_custom_call.1} parent=11 // pred_check
          %p218 = pneg %p154
        $region14: #{tpu_custom_call.1} parent=11 // pred_check_branch
          %220 = sbr.rel (%p218) target = $region16
        $region15: #{tpu_custom_call.1} parent=11 // pred_region
          %s222 = ssub.s32 768, 768
          %223 = vsyncadd [#allocation9], %s222
          %s224 = sshll.u32 [#allocation8], 4
          %s225 = int_to_ptr.vmem [resolvable:$true] %s224
          %230 = dma.hbm_to_vmem [thread:$0]  %s3, 768, %s225, [#allocation9], 256, 256, 16
        $region16: #{tpu_custom_call.1} parent=11 // pred_fallthru
          _
        // Predicated region
        $region17: #{tpu_custom_call.1} parent=11 // pred_check
          %p231 = pneg %p175
        $region18: #{tpu_custom_call.1} parent=11 // pred_check_branch
          %233 = sbr.rel (%p231) target = $region20
        $region19: #{tpu_custom_call.1} parent=11 // pred_region
          _
        $region20: #{tpu_custom_call.1} parent=11 // pred_fallthru
          _
      $region12: #{tpu_custom_call.1} parent=5 // pred_fallthru
        _
      %p234 = scmp.lt.s32.totalorder %s21, 4
      // Predicated region
      $region21: #{tpu_custom_call.1} parent=5 // pred_check
        %p235 = pneg %p234
      $region22: #{tpu_custom_call.1} parent=5 // pred_check_branch
        %237 = sbr.rel (%p235) target = $region24
      $region23: #{tpu_custom_call.1} parent=5 // pred_region
        // Predicated region
        $region25: #{tpu_custom_call.1} parent=23 // pred_check
          %p238 = pneg %p55
        $region26: #{tpu_custom_call.1} parent=23 // pred_check_branch
          %240 = sbr.rel (%p238) target = $region28
        $region27: #{tpu_custom_call.1} parent=23 // pred_region
          %s241 = sand.u32 %s45, 1
          %s242 = scalar_lea.sflag [#allocation3], %s241
          %s243 = sand.u32 %s45, 1
          %s244 = smul.addr %s243, 32
          %s245 = scalar_lea.vmem [#allocation2], %s244
          %s247 = ssub.s32 512, 512
          %248 = vsyncadd %s242, %s247
          %s249 = smul.addr %s29, 4
          %s250 = smul.addr %s28, 8
          %s251 = sadd.s32 %s249, %s250
          %s252 = smul.addr %s251, 128
          %s253 = scalar_lea.hbm %s0, %s252
          %s255 = sshll.u32 %s245, 4
          %s256 = int_to_ptr.vmem [resolvable:$true] %s255
          %258 = dma.hbm_to_vmem [thread:$0]  %s253, 512, %s256, %s242
        $region28: #{tpu_custom_call.1} parent=23 // pred_fallthru
          _
        // Predicated region
        $region29: #{tpu_custom_call.1} parent=23 // pred_check
          %p259 = pneg %p91
        $region30: #{tpu_custom_call.1} parent=23 // pred_check_branch
          %261 = sbr.rel (%p259) target = $region32
        $region31: #{tpu_custom_call.1} parent=23 // pred_region
          %s262 = sand.u32 %s21, 1
          %s263 = scalar_lea.sflag [#allocation6], %s262
          %s264 = sand.u32 %s81, 1
          %s265 = smul.addr %s264, 4
          %s266 = scalar_lea.vmem [#allocation5], %s265
          %s267 = smul.u32 %s29, 8
          %s268 = ssub.s32 %s267, 1
          %p269 = scmp.gt.s32.totalorder %s268, 0
          %s270 = scalar_select %p269, %s268, 0
          %s272 = ssub.s32 64, 64
          %273 = vsyncadd %s263, %s272
          %s274 = smul.addr %s270, 4
          %s275 = smul.addr %s28, 64
          %s276 = sadd.s32 %s274, %s275
          %s277 = smul.addr %s276, 16
          %s278 = scalar_lea.hbm %s1, %s277
          %s280 = sshll.u32 %s266, 4
          %s281 = int_to_ptr.vmem [resolvable:$true] %s280
          %283 = dma.hbm_to_vmem [thread:$0]  %s278, 64, %s281, %s263
        $region32: #{tpu_custom_call.1} parent=23 // pred_fallthru
          _
        // Predicated region
        $region33: #{tpu_custom_call.1} parent=23 // pred_check
          %p284 = pneg %p127
        $region34: #{tpu_custom_call.1} parent=23 // pred_check_branch
          %286 = sbr.rel (%p284) target = $region36
        $region35: #{tpu_custom_call.1} parent=23 // pred_region
          %s287 = sand.u32 %s21, 1
          %s288 = scalar_lea.sflag [#allocation6], %s287
          %s289 = sand.u32 %s117, 1
          %s290 = smul.addr %s289, 4
          %s291 = scalar_lea.vmem [#allocation7], %s290
          %s292 = sadd.s32 %s29, 1
          %s293 = smul.u32 %s292, 8
          %p294 = scmp.lt.s32.totalorder %s293, 15
          %s295 = scalar_select %p294, %s293, 15
          %s297 = ssub.s32 64, 64
          %298 = vsyncadd %s288, %s297
          %s299 = smul.addr %s295, 4
          %s300 = smul.addr %s28, 64
          %s301 = sadd.s32 %s299, %s300
          %s302 = smul.addr %s301, 16
          %s303 = scalar_lea.hbm %s2, %s302
          %s305 = sshll.u32 %s291, 4
          %s306 = int_to_ptr.vmem [resolvable:$true] %s305
          %308 = dma.hbm_to_vmem [thread:$0]  %s303, 64, %s306, %s288
        $region36: #{tpu_custom_call.1} parent=23 // pred_fallthru
          _
      $region24: #{tpu_custom_call.1} parent=5 // pred_fallthru
        _
      %p309 = scmp.le.s32.totalorder 1, %s21
      %p310 = scmp.lt.s32.totalorder %s21, 5
      %p311 = pnand %p309, %p310
      %p312 = pneg %p311
      // Predicated region
      $region37: #{tpu_custom_call.1} parent=5 // pred_check
        _
      $region38: #{tpu_custom_call.1} parent=5 // pred_check_branch
        %314 = sbr.rel (%p311) target = $region40
      $region39: #{tpu_custom_call.1} parent=5 // pred_region
        %s315 = ssub.s32 %s21, 1
        %s316 = sand.u32 %s48, 1
        %s317 = scalar_lea.sflag [#allocation3], %s316
        %s318 = sand.u32 %s48, 1
        %s319 = smul.addr %s318, 32
        %s320 = scalar_lea.vmem [#allocation2], %s319
        // Predicated region
        $region41: #{tpu_custom_call.1} parent=39 // pred_check
          %p321 = pneg %p61
        $region42: #{tpu_custom_call.1} parent=39 // pred_check_branch
          %323 = sbr.rel (%p321) target = $region44
        $region43: #{tpu_custom_call.1} parent=39 // pred_region
          %324 = dma.done %s317, 512
        $region44: #{tpu_custom_call.1} parent=39 // pred_fallthru
          _
        %s325 = sand.u32 %s26, 1
        %s326 = scalar_lea.sflag [#allocation6], %s325
        %s327 = sand.u32 %s84, 1
        %s328 = smul.addr %s327, 4
        %s329 = scalar_lea.vmem [#allocation5], %s328
        // Predicated region
        $region45: #{tpu_custom_call.1} parent=39 // pred_check
          %p330 = pneg %p97
        $region46: #{tpu_custom_call.1} parent=39 // pred_check_branch
          %332 = sbr.rel (%p330) target = $region48
        $region47: #{tpu_custom_call.1} parent=39 // pred_region
          %333 = dma.done %s326, 64
        $region48: #{tpu_custom_call.1} parent=39 // pred_fallthru
          _
        %s334 = sand.u32 %s26, 1
        %s335 = scalar_lea.sflag [#allocation6], %s334
        %s336 = sand.u32 %s120, 1
        %s337 = smul.addr %s336, 4
        %s338 = scalar_lea.vmem [#allocation7], %s337
        // Predicated region
        $region49: #{tpu_custom_call.1} parent=39 // pred_check
          %p339 = pneg %p133
        $region50: #{tpu_custom_call.1} parent=39 // pred_check_branch
          %341 = sbr.rel (%p339) target = $region52
        $region51: #{tpu_custom_call.1} parent=39 // pred_region
          %342 = dma.done %s335, 64
        $region52: #{tpu_custom_call.1} parent=39 // pred_fallthru
          _
        // Predicated region
        $region53: #{tpu_custom_call.1} parent=39 // pred_check
          %p343 = pneg %p154
        $region54: #{tpu_custom_call.1} parent=39 // pred_check_branch
          %345 = sbr.rel (%p343) target = $region56
        $region55: #{tpu_custom_call.1} parent=39 // pred_region
          %346 = dma.done [#allocation9], 768
        $region56: #{tpu_custom_call.1} parent=39 // pred_fallthru
          _
        %s347 = sand.u32 %s48, 1
        %s348 = scalar_lea.sflag [#allocation3], %s347
        %s349 = sand.u32 %s48, 1
        %s350 = smul.addr %s349, 32
        %s351 = scalar_lea.vmem [#allocation2], %s350
        %p352 = pneg %p61
        %p353 = pneg %p58
        %s354 = sand.u32 %s26, 1
        %s355 = scalar_lea.sflag [#allocation6], %s354
        %s356 = sand.u32 %s84, 1
        %s357 = smul.addr %s356, 4
        %s358 = scalar_lea.vmem [#allocation5], %s357
        %p359 = pneg %p97
        %p360 = pneg %p94
        %s361 = sand.u32 %s26, 1
        %s362 = scalar_lea.sflag [#allocation6], %s361
        %s363 = sand.u32 %s120, 1
        %s364 = smul.addr %s363, 4
        %s365 = scalar_lea.vmem [#allocation7], %s364
        %p366 = pneg %p133
        %p367 = pneg %p130
        %p368 = pneg %p154
        %p369 = pneg %p151
        %p370 = pneg %p175
        %p371 = pneg %p172
        %p372 = pneg %p203
        %p373 = pneg %p200
        %s374 = sand.u32 %s190, 1
        %s375 = scalar_lea.sflag [#allocation4], %s374
        %s376 = sand.u32 %s190, 1
        %s377 = smul.addr %s376, 32
        %s378 = scalar_lea.vmem [#allocation10], %s377
        %s379 = smul.u32 %s31, 8
        %s380 = ssub.s32 %s379, 1
        %p381 = scmp.gt.s32.totalorder %s380, 0
        %s382 = scalar_select %p381, %s380, 0
        %s383 = sadd.s32 %s31, 1
        %s384 = smul.u32 %s383, 8
        %p385 = scmp.lt.s32.totalorder %s384, 15
        %s386 = scalar_select %p385, %s384, 15
        %p387 = scmp.eq.s32.totalorder %s31, 0
        %p388 = scmp.eq.s32.totalorder %s31, 1
        %v389 = vld [vmem:[%s320] sm:$0xff]
        %v390 = vld [vmem:[%s320 + $0x8] sm:$0xff]
        %v391 = vld [vmem:[%s320 + $0x10] sm:$0xff]
        %v392 = vld [vmem:[%s320 + $0x18] sm:$0xff]
        %v393 = vld [vmem:[%s329] sm:$0xf]
        %v394 = vld [vmem:[%s338] sm:$0xf]
        %s395 = scalar_select %p387, 1, 0
        %v396 = vstv %s395
        %vm397 = vcmp.eq.s32.totalorder %v396, 1
        %v398 = vsel %vm397, 0.0, %v393
        %s399 = scalar_select %p388, 1, 0
        %v400 = vstv %s399
        %vm401 = vcmp.eq.s32.totalorder %v400, 1
        %v402 = vsel %vm401, 0.0, %v394
        %v403 = vlaneseq
        %v404 = vshrl.u32 %v403, 7
        %v405 = vlaneseq
        %v406 = vand.u32 %v405, 127
        %v407 = vadd.s32 %v406, 128
        %v408 = vadd.s32 %v406, 256
        %v409 = vadd.s32 %v406, 384
        %vm410 = vcmp.ge.s32.totalorder %v406, 32
        %vm411 = vcmp.ge.s32.totalorder %v407, 32
        %vm412 = vcmp.ge.s32.totalorder %v408, 32
        %vm413 = vcmp.ge.s32.totalorder %v409, 32
        %vm414 = vcmp.lt.s32.totalorder %v406, 480
        %vm415 = vcmp.lt.s32.totalorder %v407, 480
        %vm416 = vcmp.lt.s32.totalorder %v408, 480
        %vm417 = vcmp.lt.s32.totalorder %v409, 480
        %418 = vrot.lane.b32.xlu0 %v389, 32
        %v419 = vpop.permute.xlu0 %418
        %420 = vrot.lane.b32.xlu0 %v390, 32
        %v421 = vpop.permute.xlu0 %420
        %422 = vrot.lane.b32.xlu0 %v391, 32
        %v423 = vpop.permute.xlu0 %422
        %424 = vrot.lane.b32.xlu0 %v392, 32
        %v425 = vpop.permute.xlu0 %424
        %vm426 = vcmp.lt.s32.totalorder %v406, 32
        %v427 = vsel %vm426, %v423, %v425
        %v428 = vsel %vm426, %v421, %v423
        %v429 = vsel %vm426, %v419, %v421
        %v430 = vsel %vm426, %v425, %v419
        %v431 = vsel %vm410, %v430, 0.0
        %v432 = vsel %vm411, %v429, 0.0
        %v433 = vsel %vm412, %v428, 0.0
        %v434 = vsel %vm413, %v427, 0.0
        %435 = vrot.lane.b32.xlu0 %v389, 96
        %v436 = vpop.permute.xlu0 %435
        %437 = vrot.lane.b32.xlu0 %v390, 96
        %v438 = vpop.permute.xlu0 %437
        %439 = vrot.lane.b32.xlu0 %v391, 96
        %v440 = vpop.permute.xlu0 %439
        %441 = vrot.lane.b32.xlu0 %v392, 96
        %v442 = vpop.permute.xlu0 %441
        %vm443 = vcmp.lt.s32.totalorder %v406, 96
        %v444 = vsel %vm443, %v440, %v442
        %v445 = vsel %vm443, %v438, %v440
        %v446 = vsel %vm443, %v436, %v438
        %v447 = vsel %vm443, %v442, %v436
        %v448 = vsel %vm414, %v446, 0.0
        %v449 = vsel %vm415, %v445, 0.0
        %v450 = vsel %vm416, %v444, 0.0
        %v451 = vsel %vm417, %v447, 0.0
        %s452 = scalar_lea.vmem [#allocation8], 16
        %v453 = vld [vmem:[%s452] ss:$4 sm:$0xf]
        %v455 = vlaneseq
        %v456 = vshrl.u32 %v455, 7
        %v457 = vsub.s32 0, %v456
        %v458 = vrot.slane %v453, %v457
        %v459 = vlaneseq
        %v460 = vshrl.u32 %v459, 7
        %v461 = vsub.s32 1, %v460
        %v462 = vrot.slane %v453, %v461
        %v463 = vlaneseq
        %v464 = vshrl.u32 %v463, 7
        %v465 = vsub.s32 2, %v464
        %v466 = vrot.slane %v453, %v465
        %v467 = vlaneseq
        %v468 = vshrl.u32 %v467, 7
        %v469 = vsub.s32 3, %v468
        %v470 = vrot.slane %v453, %v469
        %v475 = vmul.f32 %v431, %v458
        %v476 = vmul.f32 %v432, %v462
        %v477 = vmul.f32 %v433, %v466
        %v478 = vmul.f32 %v434, %v470
        %v479 = vadd.f32 %v475, 0.0
        %v480 = vadd.f32 %v476, 0.0
        %v481 = vadd.f32 %v477, 0.0
        %v482 = vadd.f32 %v478, 0.0
        %s483 = scalar_lea.vmem %s452, 1 [#allocation8]
        %v484 = vld [vmem:[%s483] ss:$4 sm:$0xf]
        %v486 = vlaneseq
        %v487 = vshrl.u32 %v486, 7
        %v488 = vsub.s32 0, %v487
        %v489 = vrot.slane %v484, %v488
        %v490 = vlaneseq
        %v491 = vshrl.u32 %v490, 7
        %v492 = vsub.s32 1, %v491
        %v493 = vrot.slane %v484, %v492
        %v494 = vlaneseq
        %v495 = vshrl.u32 %v494, 7
        %v496 = vsub.s32 2, %v495
        %v497 = vrot.slane %v484, %v496
        %v498 = vlaneseq
        %v499 = vshrl.u32 %v498, 7
        %v500 = vsub.s32 3, %v499
        %v501 = vrot.slane %v484, %v500
        %v506 = vmul.f32 %v389, %v489
        %v507 = vmul.f32 %v390, %v493
        %v508 = vmul.f32 %v391, %v497
        %v509 = vmul.f32 %v392, %v501
        %v510 = vadd.f32 %v479, %v506
        %v511 = vadd.f32 %v480, %v507
        %v512 = vadd.f32 %v481, %v508
        %v513 = vadd.f32 %v482, %v509
        %s514 = scalar_lea.vmem %s452, 2 [#allocation8]
        %v515 = vld [vmem:[%s514] ss:$4 sm:$0xf]
        %v517 = vlaneseq
        %v518 = vshrl.u32 %v517, 7
        %v519 = vsub.s32 0, %v518
        %v520 = vrot.slane %v515, %v519
        %v521 = vlaneseq
        %v522 = vshrl.u32 %v521, 7
        %v523 = vsub.s32 1, %v522
        %v524 = vrot.slane %v515, %v523
        %v525 = vlaneseq
        %v526 = vshrl.u32 %v525, 7
        %v527 = vsub.s32 2, %v526
        %v528 = vrot.slane %v515, %v527
        %v529 = vlaneseq
        %v530 = vshrl.u32 %v529, 7
        %v531 = vsub.s32 3, %v530
        %v532 = vrot.slane %v515, %v531
        %v537 = vmul.f32 %v448, %v520
        %v538 = vmul.f32 %v449, %v524
        %v539 = vmul.f32 %v450, %v528
        %v540 = vmul.f32 %v451, %v532
        %v541 = vadd.f32 %v510, %v537
        %v542 = vadd.f32 %v511, %v538
        %v543 = vadd.f32 %v512, %v539
        %v544 = vadd.f32 %v513, %v540
        %vm545 = vcmp.eq.s32.totalorder %v404, 0
        %v546 = vrot.slane %v389, 7
        %v547 = vrot.slane %v390, 7
        %v548 = vrot.slane %v391, 7
        %v549 = vrot.slane %v392, 7
        %v551 = vlaneseq
        %v552 = vshrl.u32 %v551, 7
        %v553 = vsub.s32 0, %v552
        %v554 = vrot.slane %v398, %v553
        %v555 = vlaneseq
        %v556 = vshrl.u32 %v555, 7
        %v557 = vsub.s32 1, %v556
        %v558 = vrot.slane %v398, %v557
        %v559 = vlaneseq
        %v560 = vshrl.u32 %v559, 7
        %v561 = vsub.s32 2, %v560
        %v562 = vrot.slane %v398, %v561
        %v563 = vlaneseq
        %v564 = vshrl.u32 %v563, 7
        %v565 = vsub.s32 3, %v564
        %v566 = vrot.slane %v398, %v565
        %v571 = vsel %vm545, %v554, %v546
        %v572 = vsel %vm545, %v558, %v547
        %v573 = vsel %vm545, %v562, %v548
        %v574 = vsel %vm545, %v566, %v549
        %575 = vrot.lane.b32.xlu0 %v571, 32
        %v576 = vpop.permute.xlu0 %575
        %577 = vrot.lane.b32.xlu0 %v572, 32
        %v578 = vpop.permute.xlu0 %577
        %579 = vrot.lane.b32.xlu0 %v573, 32
        %v580 = vpop.permute.xlu0 %579
        %581 = vrot.lane.b32.xlu0 %v574, 32
        %v582 = vpop.permute.xlu0 %581
        %v583 = vsel %vm426, %v580, %v582
        %v584 = vsel %vm426, %v578, %v580
        %v585 = vsel %vm426, %v576, %v578
        %v586 = vsel %vm426, %v582, %v576
        %v587 = vsel %vm410, %v586, 0.0
        %v588 = vsel %vm411, %v585, 0.0
        %v589 = vsel %vm412, %v584, 0.0
        %v590 = vsel %vm413, %v583, 0.0
        %591 = vrot.lane.b32.xlu0 %v571, 96
        %v592 = vpop.permute.xlu0 %591
        %593 = vrot.lane.b32.xlu0 %v572, 96
        %v594 = vpop.permute.xlu0 %593
        %595 = vrot.lane.b32.xlu0 %v573, 96
        %v596 = vpop.permute.xlu0 %595
        %597 = vrot.lane.b32.xlu0 %v574, 96
        %v598 = vpop.permute.xlu0 %597
        %v599 = vsel %vm443, %v596, %v598
        %v600 = vsel %vm443, %v594, %v596
        %v601 = vsel %vm443, %v592, %v594
        %v602 = vsel %vm443, %v598, %v592
        %v603 = vsel %vm414, %v601, 0.0
        %v604 = vsel %vm415, %v600, 0.0
        %v605 = vsel %vm416, %v599, 0.0
        %v606 = vsel %vm417, %v602, 0.0
        %v607 = vld [vmem:[#allocation8] ss:$4 sm:$0xf]
        %v609 = vlaneseq
        %v610 = vshrl.u32 %v609, 7
        %v611 = vsub.s32 0, %v610
        %v612 = vrot.slane %v607, %v611
        %v613 = vlaneseq
        %v614 = vshrl.u32 %v613, 7
        %v615 = vsub.s32 1, %v614
        %v616 = vrot.slane %v607, %v615
        %v617 = vlaneseq
        %v618 = vshrl.u32 %v617, 7
        %v619 = vsub.s32 2, %v618
        %v620 = vrot.slane %v607, %v619
        %v621 = vlaneseq
        %v622 = vshrl.u32 %v621, 7
        %v623 = vsub.s32 3, %v622
        %v624 = vrot.slane %v607, %v623
        %v629 = vmul.f32 %v587, %v612
        %v630 = vmul.f32 %v588, %v616
        %v631 = vmul.f32 %v589, %v620
        %v632 = vmul.f32 %v590, %v624
        %v633 = vadd.f32 %v541, %v629
        %v634 = vadd.f32 %v542, %v630
        %v635 = vadd.f32 %v543, %v631
        %v636 = vadd.f32 %v544, %v632
        %s637 = scalar_lea.vmem [#allocation8], 1
        %v638 = vld [vmem:[%s637] ss:$4 sm:$0xf]
        %v640 = vlaneseq
        %v641 = vshrl.u32 %v640, 7
        %v642 = vsub.s32 0, %v641
        %v643 = vrot.slane %v638, %v642
        %v644 = vlaneseq
        %v645 = vshrl.u32 %v644, 7
        %v646 = vsub.s32 1, %v645
        %v647 = vrot.slane %v638, %v646
        %v648 = vlaneseq
        %v649 = vshrl.u32 %v648, 7
        %v650 = vsub.s32 2, %v649
        %v651 = vrot.slane %v638, %v650
        %v652 = vlaneseq
        %v653 = vshrl.u32 %v652, 7
        %v654 = vsub.s32 3, %v653
        %v655 = vrot.slane %v638, %v654
        %v660 = vmul.f32 %v571, %v643
        %v661 = vmul.f32 %v572, %v647
        %v662 = vmul.f32 %v573, %v651
        %v663 = vmul.f32 %v574, %v655
        %v664 = vadd.f32 %v633, %v660
        %v665 = vadd.f32 %v634, %v661
        %v666 = vadd.f32 %v635, %v662
        %v667 = vadd.f32 %v636, %v663
        %s668 = scalar_lea.vmem [#allocation8], 2
        %v669 = vld [vmem:[%s668] ss:$4 sm:$0xf]
        %v671 = vlaneseq
        %v672 = vshrl.u32 %v671, 7
        %v673 = vsub.s32 0, %v672
        %v674 = vrot.slane %v669, %v673
        %v675 = vlaneseq
        %v676 = vshrl.u32 %v675, 7
        %v677 = vsub.s32 1, %v676
        %v678 = vrot.slane %v669, %v677
        %v679 = vlaneseq
        %v680 = vshrl.u32 %v679, 7
        %v681 = vsub.s32 2, %v680
        %v682 = vrot.slane %v669, %v681
        %v683 = vlaneseq
        %v684 = vshrl.u32 %v683, 7
        %v685 = vsub.s32 3, %v684
        %v686 = vrot.slane %v669, %v685
        %v691 = vmul.f32 %v603, %v674
        %v692 = vmul.f32 %v604, %v678
        %v693 = vmul.f32 %v605, %v682
        %v694 = vmul.f32 %v606, %v686
        %v695 = vadd.f32 %v664, %v691
        %v696 = vadd.f32 %v665, %v692
        %v697 = vadd.f32 %v666, %v693
        %v698 = vadd.f32 %v667, %v694
        %vm699 = vcmp.eq.s32.totalorder %v404, 7
        %v700 = vrot.slane %v389, 1
        %v701 = vrot.slane %v390, 1
        %v702 = vrot.slane %v391, 1
        %v703 = vrot.slane %v392, 1
        %v705 = vlaneseq
        %v706 = vshrl.u32 %v705, 7
        %v707 = vsub.s32 0, %v706
        %v708 = vrot.slane %v402, %v707
        %v709 = vlaneseq
        %v710 = vshrl.u32 %v709, 7
        %v711 = vsub.s32 1, %v710
        %v712 = vrot.slane %v402, %v711
        %v713 = vlaneseq
        %v714 = vshrl.u32 %v713, 7
        %v715 = vsub.s32 2, %v714
        %v716 = vrot.slane %v402, %v715
        %v717 = vlaneseq
        %v718 = vshrl.u32 %v717, 7
        %v719 = vsub.s32 3, %v718
        %v720 = vrot.slane %v402, %v719
        %v725 = vsel %vm699, %v708, %v700
        %v726 = vsel %vm699, %v712, %v701
        %v727 = vsel %vm699, %v716, %v702
        %v728 = vsel %vm699, %v720, %v703
        %729 = vrot.lane.b32.xlu0 %v725, 32
        %v730 = vpop.permute.xlu0 %729
        %731 = vrot.lane.b32.xlu0 %v726, 32
        %v732 = vpop.permute.xlu0 %731
        %733 = vrot.lane.b32.xlu0 %v727, 32
        %v734 = vpop.permute.xlu0 %733
        %735 = vrot.lane.b32.xlu0 %v728, 32
        %v736 = vpop.permute.xlu0 %735
        %v737 = vsel %vm426, %v734, %v736
        %v738 = vsel %vm426, %v732, %v734
        %v739 = vsel %vm426, %v730, %v732
        %v740 = vsel %vm426, %v736, %v730
        %v741 = vsel %vm410, %v740, 0.0
        %v742 = vsel %vm411, %v739, 0.0
        %v743 = vsel %vm412, %v738, 0.0
        %v744 = vsel %vm413, %v737, 0.0
        %745 = vrot.lane.b32.xlu0 %v725, 96
        %v746 = vpop.permute.xlu0 %745
        %747 = vrot.lane.b32.xlu0 %v726, 96
        %v748 = vpop.permute.xlu0 %747
        %749 = vrot.lane.b32.xlu0 %v727, 96
        %v750 = vpop.permute.xlu0 %749
        %751 = vrot.lane.b32.xlu0 %v728, 96
        %v752 = vpop.permute.xlu0 %751
        %v753 = vsel %vm443, %v750, %v752
        %v754 = vsel %vm443, %v748, %v750
        %v755 = vsel %vm443, %v746, %v748
        %v756 = vsel %vm443, %v752, %v746
        %v757 = vsel %vm414, %v755, 0.0
        %v758 = vsel %vm415, %v754, 0.0
        %v759 = vsel %vm416, %v753, 0.0
        %v760 = vsel %vm417, %v756, 0.0
        %s761 = scalar_lea.vmem [#allocation8], 32
        %v762 = vld [vmem:[%s761] ss:$4 sm:$0xf]
        %v764 = vlaneseq
        %v765 = vshrl.u32 %v764, 7
        %v766 = vsub.s32 0, %v765
        %v767 = vrot.slane %v762, %v766
        %v768 = vlaneseq
        %v769 = vshrl.u32 %v768, 7
        %v770 = vsub.s32 1, %v769
        %v771 = vrot.slane %v762, %v770
        %v772 = vlaneseq
        %v773 = vshrl.u32 %v772, 7
        %v774 = vsub.s32 2, %v773
        %v775 = vrot.slane %v762, %v774
        %v776 = vlaneseq
        %v777 = vshrl.u32 %v776, 7
        %v778 = vsub.s32 3, %v777
        %v779 = vrot.slane %v762, %v778
        %v784 = vmul.f32 %v741, %v767
        %v785 = vmul.f32 %v742, %v771
        %v786 = vmul.f32 %v743, %v775
        %v787 = vmul.f32 %v744, %v779
        %v788 = vadd.f32 %v695, %v784
        %v789 = vadd.f32 %v696, %v785
        %v790 = vadd.f32 %v697, %v786
        %v791 = vadd.f32 %v698, %v787
        %s792 = scalar_lea.vmem %s761, 1 [#allocation8]
        %v793 = vld [vmem:[%s792] ss:$4 sm:$0xf]
        %v795 = vlaneseq
        %v796 = vshrl.u32 %v795, 7
        %v797 = vsub.s32 0, %v796
        %v798 = vrot.slane %v793, %v797
        %v799 = vlaneseq
        %v800 = vshrl.u32 %v799, 7
        %v801 = vsub.s32 1, %v800
        %v802 = vrot.slane %v793, %v801
        %v803 = vlaneseq
        %v804 = vshrl.u32 %v803, 7
        %v805 = vsub.s32 2, %v804
        %v806 = vrot.slane %v793, %v805
        %v807 = vlaneseq
        %v808 = vshrl.u32 %v807, 7
        %v809 = vsub.s32 3, %v808
        %v810 = vrot.slane %v793, %v809
        %v815 = vmul.f32 %v725, %v798
        %v816 = vmul.f32 %v726, %v802
        %v817 = vmul.f32 %v727, %v806
        %v818 = vmul.f32 %v728, %v810
        %v819 = vadd.f32 %v788, %v815
        %v820 = vadd.f32 %v789, %v816
        %v821 = vadd.f32 %v790, %v817
        %v822 = vadd.f32 %v791, %v818
        %s823 = scalar_lea.vmem %s761, 2 [#allocation8]
        %v824 = vld [vmem:[%s823] ss:$4 sm:$0xf]
        %v826 = vlaneseq
        %v827 = vshrl.u32 %v826, 7
        %v828 = vsub.s32 0, %v827
        %v829 = vrot.slane %v824, %v828
        %v830 = vlaneseq
        %v831 = vshrl.u32 %v830, 7
        %v832 = vsub.s32 1, %v831
        %v833 = vrot.slane %v824, %v832
        %v834 = vlaneseq
        %v835 = vshrl.u32 %v834, 7
        %v836 = vsub.s32 2, %v835
        %v837 = vrot.slane %v824, %v836
        %v838 = vlaneseq
        %v839 = vshrl.u32 %v838, 7
        %v840 = vsub.s32 3, %v839
        %v841 = vrot.slane %v824, %v840
        %v846 = vmul.f32 %v757, %v829
        %v847 = vmul.f32 %v758, %v833
        %v848 = vmul.f32 %v759, %v837
        %v849 = vmul.f32 %v760, %v841
        %v850 = vadd.f32 %v819, %v846
        %v851 = vadd.f32 %v820, %v847
        %v852 = vadd.f32 %v821, %v848
        %v853 = vadd.f32 %v822, %v849
        %v854 = vld [vmem:[%s4] sm:$0xf]
        %v856 = vlaneseq
        %v857 = vshrl.u32 %v856, 7
        %v858 = vsub.s32 0, %v857
        %v859 = vrot.slane %v854, %v858
        %v860 = vlaneseq
        %v861 = vshrl.u32 %v860, 7
        %v862 = vsub.s32 1, %v861
        %v863 = vrot.slane %v854, %v862
        %v864 = vlaneseq
        %v865 = vshrl.u32 %v864, 7
        %v866 = vsub.s32 2, %v865
        %v867 = vrot.slane %v854, %v866
        %v868 = vlaneseq
        %v869 = vshrl.u32 %v868, 7
        %v870 = vsub.s32 3, %v869
        %v871 = vrot.slane %v854, %v870
        %v876 = vadd.f32 %v850, %v859
        %v877 = vadd.f32 %v851, %v863
        %v878 = vadd.f32 %v852, %v867
        %v879 = vadd.f32 %v853, %v871
        %880 = vst [vmem:[%s378] sm:$0xff] %v876
        %881 = vst [vmem:[%s378 + $0x8] sm:$0xff] %v877
        %882 = vst [vmem:[%s378 + $0x10] sm:$0xff] %v878
        %883 = vst [vmem:[%s378 + $0x18] sm:$0xff] %v879
        %s884 = sand.u32 %s190, 1
        %s885 = scalar_lea.sflag [#allocation4], %s884
        %s886 = sand.u32 %s190, 1
        %s887 = smul.addr %s886, 32
        %s888 = scalar_lea.vmem [#allocation10], %s887
        // Predicated region
        $region57: #{tpu_custom_call.1} parent=39 // pred_check
          %p889 = pneg %p200
        $region58: #{tpu_custom_call.1} parent=39 // pred_check_branch
          %891 = sbr.rel (%p889) target = $region60
        $region59: #{tpu_custom_call.1} parent=39 // pred_region
          %s893 = ssub.s32 512, 512
          %894 = vsyncadd %s885, %s893
          %s895 = smul.addr %s31, 4
          %s896 = smul.addr %s30, 8
          %s897 = sadd.s32 %s895, %s896
          %s898 = smul.addr %s897, 128
          %s899 = scalar_lea.hbm %s5, %s898
          %s901 = sshll.u32 %s888, 4
          %s902 = int_to_ptr.vmem [resolvable:$true] %s901
          %904 = dma.vmem_to_hbm [thread:$0]  %s902, 512, %s899, %s885
        $region60: #{tpu_custom_call.1} parent=39 // pred_fallthru
          _
      $region40: #{tpu_custom_call.1} parent=5 // pred_fallthru
        _
      %p905 = scmp.le.s32.totalorder 2, %s21
      // Predicated region
      $region61: #{tpu_custom_call.1} parent=5 // pred_check
        %p906 = pneg %p905
      $region62: #{tpu_custom_call.1} parent=5 // pred_check_branch
        %908 = sbr.rel (%p906) target = $region64
      $region63: #{tpu_custom_call.1} parent=5 // pred_region
        %s909 = ssub.s32 %s21, 2
        // Predicated region
        $region65: #{tpu_custom_call.1} parent=63 // pred_check
          %p910 = pneg %p206
        $region66: #{tpu_custom_call.1} parent=63 // pred_check_branch
          %912 = sbr.rel (%p910) target = $region68
        $region67: #{tpu_custom_call.1} parent=63 // pred_region
          %s913 = sand.u32 %s191, 1
          %s914 = scalar_lea.sflag [#allocation4], %s913
          %s915 = sand.u32 %s191, 1
          %s916 = smul.addr %s915, 32
          %s917 = scalar_lea.vmem [#allocation10], %s916
          %918 = dma.done %s914, 512
        $region68: #{tpu_custom_call.1} parent=63 // pred_fallthru
          _
      $region64: #{tpu_custom_call.1} parent=5 // pred_fallthru
        _
    $region6: #{tpu_custom_call.1} parent=1 // loop_footer
      %s25 = sadd.s32 1, %s21
    $region7: #{tpu_custom_call.1} parent=1 // loop_footer_branch
      %20 = sbr.rel target = $region3
    $region8: #{tpu_custom_call.1} parent=1 // loop_exit
      _
    %919 = vsyncpa [#allocation3], 1
    %s920 = scalar_lea.sflag [#allocation3], 1
    %921 = vsyncpa %s920, 1
    %922 = vsyncpa [#allocation6], 1
    %s923 = scalar_lea.sflag [#allocation6], 1
    %924 = vsyncpa %s923, 1
    %925 = vsyncpa [#allocation9], 1
    %926 = vsyncpa [#allocation4], 1
    %s927 = scalar_lea.sflag [#allocation4], 1
    %928 = vsyncpa %s927, 1

</llo_original>
